<compile_context>
chip_gen: v5e
topology: v5e:2x2
jax: 0.10.0
libtpu: 0.0.40
codegen_flags: <defaults>
</compile_context>

<pallas_src>
import jax
import jax.numpy as jnp
from jax.experimental import pallas as pl
from jax.experimental.pallas import tpu as pltpu

VOCAB_LEN = 3


def _cdiv(a, b):
    return -(-a // b)


def _round_up(x, m):
    return _cdiv(x, m) * m


def _pack_tokens(x, n, rows):
    """Flatten to int32 and pack onto (rows, 128) sublane x lane layout."""
    flat = x.reshape(-1).astype(jnp.int32)
    pad = rows * 128 - n
    if pad:
        flat = jnp.pad(flat, (0, pad))
    return flat.reshape(rows, 128)


def _embed_kernel(idx_ref, emb_ref, logits_ref):
    """Embedding lookup only.

    idx_ref:    (tile_r, 128)    int32  VMEM  -- tokens, sublane x lane packed
    emb_ref:    (V, C)           f32    SMEM  -- embedding table (scalar reads)
    logits_ref: (C, tile_r, 128) f32    VMEM  -- class-major logits
    """
    v_dim, c_dim = emb_ref.shape
    idx = idx_ref[...]

    # One compare+cast per vocab entry; reused for every class column.
    sel = [(idx == v).astype(jnp.float32) for v in range(v_dim)]
    for c in range(c_dim):
        lc = sel[0] * emb_ref[0, c]
        for v in range(1, v_dim):
            lc = lc + sel[v] * emb_ref[v, c]
        logits_ref[c, :, :] = lc


def _embed_loss_kernel(nv_ref, idx_ref, tgt_ref, emb_ref, logits_ref, part_ref):
    """Embedding lookup + masked per-tile cross-entropy partials.

    nv_ref:     (1,)             int32  SMEM  -- number of valid tokens (prefetch)
    idx_ref:    (tile_r, 128)    int32  VMEM
    tgt_ref:    (tile_r, 128)    int32  VMEM
    emb_ref:    (V, C)           f32    SMEM
    logits_ref: (C, tile_r, 128) f32    VMEM
    part_ref:   (1, 8, 128)      f32    VMEM  -- per-(sublane,lane) loss partial
    """
    step = pl.program_id(0)
    v_dim, c_dim = emb_ref.shape
    idx = idx_ref[...]
    tgt = tgt_ref[...]
    tile_r, lanes = idx.shape

    sel = [(idx == v).astype(jnp.float32) for v in range(v_dim)]

    # Per-class logits rows: scalar table reads from SMEM * VPU selects.
    lcs = []
    for c in range(c_dim):
        lc = sel[0] * emb_ref[0, c]
        for v in range(1, v_dim):
            lc = lc + sel[v] * emb_ref[v, c]
        logits_ref[c, :, :] = lc
        lcs.append(lc)

    # picked[n] = logits[n, tgt[n]]  (unrolled select over tiny C).
    picked = jnp.where(tgt == 0, lcs[0], 0.0)
    for c in range(1, c_dim):
        picked = picked + jnp.where(tgt == c, lcs[c], 0.0)

    # Numerically stable logsumexp over classes, unrolled: VALU max/add plus
    # EUP exp/log -- no cross-sublane (XLU) reduction.
    m = lcs[0]
    for c in range(1, c_dim):
        m = jnp.maximum(m, lcs[c])
    e = jnp.exp(lcs[0] - m)
    for c in range(1, c_dim):
        e = e + jnp.exp(lcs[c] - m)
    lse = jnp.log(e) + m

    # Mask padded / out-of-bounds tail tokens out of the loss.
    row = jax.lax.broadcasted_iota(jnp.int32, (tile_r, lanes), 0)
    lane = jax.lax.broadcasted_iota(jnp.int32, (tile_r, lanes), 1)
    pos = (step * tile_r + row) * lanes + lane
    valid = (pos < nv_ref[0]).astype(jnp.float32)

    loss_map = (lse - picked) * valid                      # (tile_r, 128)
    # Fold sublane groups into a single (8,128) vreg: elementwise adds of
    # vreg-aligned slabs (pure VALU).  Cross-lane reduction happens outside.
    part_ref[0, :, :] = jnp.sum(loss_map.reshape(tile_r // 8, 8, lanes), axis=0)


def bigram_forward(emb_table, idx, targets=None, *, tile_rows=256):
    """Equivalent of BigramLM.forward(idx, targets).

    tile_rows: sublane rows per grid step (x128 lanes = tokens per step).
    """
    B, T = idx.shape
    V, C = emb_table.shape
    N = B * T

    rows = _round_up(_cdiv(N, 128), 8)                 # sublane rows (mult of 8)
    tile_r = min(_round_up(max(tile_rows, 8), 8), rows)
    num_tiles = _cdiv(rows, tile_r)                    # ragged last tile allowed
    grid = (num_tiles,)

    idx_pk = _pack_tokens(idx, N, rows)
    embf = emb_table.astype(jnp.float32)               # (V, C), lives in SMEM

    emb_spec = pl.BlockSpec(memory_space=pltpu.MemorySpace.SMEM)
    cparams = pltpu.CompilerParams(
        dimension_semantics=("parallel",),
        vmem_limit_bytes=32 * 1024 * 1024,
    )

    if targets is None:
        tok_spec = pl.BlockSpec((tile_r, 128), lambda i: (i, 0))
        logit_spec = pl.BlockSpec((C, tile_r, 128), lambda i: (0, i, 0))
        logits_pk = pl.pallas_call(
            _embed_kernel,
            out_shape=jax.ShapeDtypeStruct((C, rows, 128), jnp.float32),
            grid_spec=pltpu.PrefetchScalarGridSpec(
                num_scalar_prefetch=0,
                grid=grid,
                in_specs=[tok_spec, emb_spec],
                out_specs=logit_spec,
            ),
            compiler_params=cparams,
        )(idx_pk, embf)
        # Layout plumbing back to the PyTorch (B, T, C) layout.  Consumers that
        # can take the class-major slab should use logits_pk directly.
        logits = logits_pk.reshape(C, rows * 128)[:, :N].T.reshape(B, T, C)
        return logits, None

    tgt_pk = _pack_tokens(targets, N, rows)
    nv = jnp.array([N], dtype=jnp.int32)               # scalar-prefetch arg

    tok_spec = pl.BlockSpec((tile_r, 128), lambda i, nv: (i, 0))
    logit_spec = pl.BlockSpec((C, tile_r, 128), lambda i, nv: (0, i, 0))
    part_spec = pl.BlockSpec((1, 8, 128), lambda i, nv: (i, 0, 0))

    logits_pk, partials = pl.pallas_call(
        _embed_loss_kernel,
        out_shape=(jax.ShapeDtypeStruct((C, rows, 128), jnp.float32),
                   jax.ShapeDtypeStruct((num_tiles, 8, 128), jnp.float32)),
        grid_spec=pltpu.PrefetchScalarGridSpec(
            num_scalar_prefetch=1,
            grid=grid,
            in_specs=[tok_spec, tok_spec, emb_spec],
            out_specs=(logit_spec, part_spec),
        ),
        compiler_params=cparams,
    )(nv, idx_pk, tgt_pk, embf)

    loss = jnp.sum(partials) / N
    logits = logits_pk.reshape(C, rows * 128)[:, :N].T   # (B*T, C), like PyTorch
    return logits, loss


def _reference_forward(emb_table, idx, targets):
    logits = emb_table[idx]                             # (B, T, C)
    B, T, C = logits.shape
    flat = logits.reshape(B * T, C)
    t = targets.reshape(B * T)
    lse = jax.nn.logsumexp(flat, axis=-1)
    loss = jnp.mean(lse - flat[jnp.arange(B * T), t])
    return flat, loss


if __name__ == "__main__":
    key = jax.random.PRNGKey(0)
    k_emb, k_idx, k_tgt = jax.random.split(key, 3)

    V = VOCAB_LEN
    # nn.Embedding default init: N(0, 1)
    emb_table = jax.random.normal(k_emb, (V, V), dtype=jnp.float32)

    # Case 1: small sequence (N=200 -> 2 lane rows -> 8 sublane rows, 1 tile).
    B, T = 2, 100
    idx = jax.random.randint(k_idx, (B, T), 0, V, dtype=jnp.int32)
    targets = jax.random.randint(k_tgt, (B, T), 0, V, dtype=jnp.int32)

    logits, loss = bigram_forward(emb_table, idx, targets)
    jax.block_until_ready((logits, loss))
    ref_logits, ref_loss = _reference_forward(emb_table, idx, targets)
    assert logits.shape == (B * T, V)
    assert jnp.allclose(logits, ref_logits, atol=1e-5)
    assert jnp.allclose(loss, ref_loss, atol=1e-5)

    logits_nt, loss_nt = bigram_forward(emb_table, idx, None)
    jax.block_until_ready(logits_nt)
    assert loss_nt is None
    assert logits_nt.shape == (B, T, V)
    assert jnp.allclose(logits_nt.reshape(B * T, V), ref_logits, atol=1e-5)

    # Case 2: multi-tile grid with a ragged final block.
    # N=2200 -> 18 lane rows -> 24 sublane rows; tile_rows=16 -> grid of 2,
    # last tile only half valid (exercises boundary masking on both outputs).
    B2, T2 = 2, 1100
    idx2 = jax.random.randint(jax.random.fold_in(k_idx, 1), (B2, T2), 0, V,
                              dtype=jnp.int32)
    tgt2 = jax.random.randint(jax.random.fold_in(k_tgt, 1), (B2, T2), 0, V,
                              dtype=jnp.int32)
    logits2, loss2 = bigram_forward(emb_table, idx2, tgt2, tile_rows=16)
    jax.block_until_ready((logits2, loss2))
    ref_logits2, ref_loss2 = _reference_forward(emb_table, idx2, tgt2)
    assert logits2.shape == (B2 * T2, V)
    assert jnp.allclose(logits2, ref_logits2, atol=1e-5)
    assert jnp.allclose(loss2, ref_loss2, atol=1e-5)

    logits2_nt, _ = bigram_forward(emb_table, idx2, None, tile_rows=16)
    jax.block_until_ready(logits2_nt)
    assert jnp.allclose(logits2_nt.reshape(B2 * T2, V), ref_logits2, atol=1e-5)

    # TODO(synk): BigramLM.generate is a host-side autoregressive loop (with
    # prints); it is not part of forward() and is not implemented as a kernel.
    print("KERNEL_OK")
</pallas_src>

<mosaic_0001>
module attributes {stable_mosaic.version = 11 : i64} {
  func.func @_embed_loss_kernel(%arg0: i32, %arg1: memref<1xi32, #tpu.memory_space<smem>>, %arg2: memref<8x128xi32, #tpu.memory_space<vmem>>, %arg3: memref<8x128xi32, #tpu.memory_space<vmem>>, %arg4: memref<3x3xf32, #tpu.memory_space<smem>>, %arg5: memref<3x8x128xf32, #tpu.memory_space<vmem>>, %arg6: memref<1x8x128xf32, #tpu.memory_space<vmem>>) attributes {dimension_semantics = [#tpu.dimension_semantics<parallel>], iteration_bounds = array<i64: 1>, scalar_prefetch = 1 : i64, scratch_operands = 0 : i64, tpu.core_type = #tpu.core_type<tc>, window_params = [{transform_indices = @transform_0, window_bounds = array<i64: 8, 128>}, {transform_indices = @transform_1, window_bounds = array<i64: 8, 128>}, {transform_indices = @transform_2, window_bounds = array<i64: 3, 3>}, {transform_indices = @transform_3, window_bounds = array<i64: 3, 8, 128>}, {transform_indices = @transform_4, window_bounds = array<i64: 1, 8, 128>}]} {
    %c0 = arith.constant 0 : index
    %c0_0 = arith.constant 0 : index
    %0 = vector.load %arg2[%c0, %c0_0] : memref<8x128xi32, #tpu.memory_space<vmem>>, vector<8x128xi32>
    %c0_1 = arith.constant 0 : index
    %c0_2 = arith.constant 0 : index
    %1 = vector.load %arg3[%c0_1, %c0_2] : memref<8x128xi32, #tpu.memory_space<vmem>>, vector<8x128xi32>
    %c0_i32 = arith.constant 0 : i32
    %2 = vector.broadcast %c0_i32 : i32 to vector<8x128xi32>
    %3 = arith.cmpi eq, %0, %2 : vector<8x128xi32>
    %4 = arith.extui %3 : vector<8x128xi1> to vector<8x128xi32>
    %5 = arith.sitofp %4 : vector<8x128xi32> to vector<8x128xf32>
    %c1_i32 = arith.constant 1 : i32
    %6 = vector.broadcast %c1_i32 : i32 to vector<8x128xi32>
    %7 = arith.cmpi eq, %0, %6 : vector<8x128xi32>
    %8 = arith.extui %7 : vector<8x128xi1> to vector<8x128xi32>
    %9 = arith.sitofp %8 : vector<8x128xi32> to vector<8x128xf32>
    %c2_i32 = arith.constant 2 : i32
    %10 = vector.broadcast %c2_i32 : i32 to vector<8x128xi32>
    %11 = arith.cmpi eq, %0, %10 : vector<8x128xi32>
    %12 = arith.extui %11 : vector<8x128xi1> to vector<8x128xi32>
    %13 = arith.sitofp %12 : vector<8x128xi32> to vector<8x128xf32>
    %c0_3 = arith.constant 0 : index
    %c0_4 = arith.constant 0 : index
    %14 = memref.load %arg4[%c0_3, %c0_4] : memref<3x3xf32, #tpu.memory_space<smem>>
    %15 = vector.broadcast %14 : f32 to vector<8x128xf32>
    %16 = arith.mulf %5, %15 : vector<8x128xf32>
    %c1 = arith.constant 1 : index
    %c0_5 = arith.constant 0 : index
    %17 = memref.load %arg4[%c1, %c0_5] : memref<3x3xf32, #tpu.memory_space<smem>>
    %18 = vector.broadcast %17 : f32 to vector<8x128xf32>
    %19 = arith.mulf %9, %18 : vector<8x128xf32>
    %20 = arith.addf %16, %19 : vector<8x128xf32>
    %c2 = arith.constant 2 : index
    %c0_6 = arith.constant 0 : index
    %21 = memref.load %arg4[%c2, %c0_6] : memref<3x3xf32, #tpu.memory_space<smem>>
    %22 = vector.broadcast %21 : f32 to vector<8x128xf32>
    %23 = arith.mulf %13, %22 : vector<8x128xf32>
    %24 = arith.addf %20, %23 : vector<8x128xf32>
    %c0_7 = arith.constant 0 : index
    %c0_8 = arith.constant 0 : index
    %c0_9 = arith.constant 0 : index
    %25 = vector.load %arg5[%c0_7, %c0_8, %c0_9] : memref<3x8x128xf32, #tpu.memory_space<vmem>>, vector<1x8x128xf32>
    %26 = vector.shape_cast %25 : vector<1x8x128xf32> to vector<8x128xf32>
    %27 = vector.shape_cast %24 : vector<8x128xf32> to vector<1x8x128xf32>
    tpu.vector_store %arg5[%c0_7, %c0_8, %c0_9], %27 {strides = array<i32>} : memref<3x8x128xf32, #tpu.memory_space<vmem>>, vector<1x8x128xf32>,
    %c0_10 = arith.constant 0 : index
    %c1_11 = arith.constant 1 : index
    %28 = memref.load %arg4[%c0_10, %c1_11] : memref<3x3xf32, #tpu.memory_space<smem>>
    %29 = vector.broadcast %28 : f32 to vector<8x128xf32>
    %30 = arith.mulf %5, %29 : vector<8x128xf32>
    %c1_12 = arith.constant 1 : index
    %c1_13 = arith.constant 1 : index
    %31 = memref.load %arg4[%c1_12, %c1_13] : memref<3x3xf32, #tpu.memory_space<smem>>
    %32 = vector.broadcast %31 : f32 to vector<8x128xf32>
    %33 = arith.mulf %9, %32 : vector<8x128xf32>
    %34 = arith.addf %30, %33 : vector<8x128xf32>
    %c2_14 = arith.constant 2 : index
    %c1_15 = arith.constant 1 : index
    %35 = memref.load %arg4[%c2_14, %c1_15] : memref<3x3xf32, #tpu.memory_space<smem>>
    %36 = vector.broadcast %35 : f32 to vector<8x128xf32>
    %37 = arith.mulf %13, %36 : vector<8x128xf32>
    %38 = arith.addf %34, %37 : vector<8x128xf32>
    %c1_16 = arith.constant 1 : index
    %c0_17 = arith.constant 0 : index
    %c0_18 = arith.constant 0 : index
    %39 = vector.load %arg5[%c1_16, %c0_17, %c0_18] : memref<3x8x128xf32, #tpu.memory_space<vmem>>, vector<1x8x128xf32>
    %40 = vector.shape_cast %39 : vector<1x8x128xf32> to vector<8x128xf32>
    %41 = vector.shape_cast %38 : vector<8x128xf32> to vector<1x8x128xf32>
    tpu.vector_store %arg5[%c1_16, %c0_17, %c0_18], %41 {strides = array<i32>} : memref<3x8x128xf32, #tpu.memory_space<vmem>>, vector<1x8x128xf32>,
    %c0_19 = arith.constant 0 : index
    %c2_20 = arith.constant 2 : index
    %42 = memref.load %arg4[%c0_19, %c2_20] : memref<3x3xf32, #tpu.memory_space<smem>>
    %43 = vector.broadcast %42 : f32 to vector<8x128xf32>
    %44 = arith.mulf %5, %43 : vector<8x128xf32>
    %c1_21 = arith.constant 1 : index
    %c2_22 = arith.constant 2 : index
    %45 = memref.load %arg4[%c1_21, %c2_22] : memref<3x3xf32, #tpu.memory_space<smem>>
    %46 = vector.broadcast %45 : f32 to vector<8x128xf32>
    %47 = arith.mulf %9, %46 : vector<8x128xf32>
    %48 = arith.addf %44, %47 : vector<8x128xf32>
    %c2_23 = arith.constant 2 : index
    %c2_24 = arith.constant 2 : index
    %49 = memref.load %arg4[%c2_23, %c2_24] : memref<3x3xf32, #tpu.memory_space<smem>>
    %50 = vector.broadcast %49 : f32 to vector<8x128xf32>
    %51 = arith.mulf %13, %50 : vector<8x128xf32>
    %52 = arith.addf %48, %51 : vector<8x128xf32>
    %c2_25 = arith.constant 2 : index
    %c0_26 = arith.constant 0 : index
    %c0_27 = arith.constant 0 : index
    %53 = vector.load %arg5[%c2_25, %c0_26, %c0_27] : memref<3x8x128xf32, #tpu.memory_space<vmem>>, vector<1x8x128xf32>
    %54 = vector.shape_cast %53 : vector<1x8x128xf32> to vector<8x128xf32>
    %55 = vector.shape_cast %52 : vector<8x128xf32> to vector<1x8x128xf32>
    tpu.vector_store %arg5[%c2_25, %c0_26, %c0_27], %55 {strides = array<i32>} : memref<3x8x128xf32, #tpu.memory_space<vmem>>, vector<1x8x128xf32>,
    %c0_i32_28 = arith.constant 0 : i32
    %56 = vector.broadcast %c0_i32_28 : i32 to vector<8x128xi32>
    %57 = arith.cmpi eq, %1, %56 : vector<8x128xi32>
    %cst = arith.constant 0.000000e+00 : f32
    %58 = vector.broadcast %cst : f32 to vector<8x128xf32>
    %59 = arith.select %57, %24, %58 : vector<8x128xi1>, vector<8x128xf32>
    %c1_i32_29 = arith.constant 1 : i32
    %60 = vector.broadcast %c1_i32_29 : i32 to vector<8x128xi32>
    %61 = arith.cmpi eq, %1, %60 : vector<8x128xi32>
    %cst_30 = arith.constant 0.000000e+00 : f32
    %62 = vector.broadcast %cst_30 : f32 to vector<8x128xf32>
    %63 = arith.select %61, %38, %62 : vector<8x128xi1>, vector<8x128xf32>
    %64 = arith.addf %59, %63 : vector<8x128xf32>
    %c2_i32_31 = arith.constant 2 : i32
    %65 = vector.broadcast %c2_i32_31 : i32 to vector<8x128xi32>
    %66 = arith.cmpi eq, %1, %65 : vector<8x128xi32>
    %cst_32 = arith.constant 0.000000e+00 : f32
    %67 = vector.broadcast %cst_32 : f32 to vector<8x128xf32>
    %68 = arith.select %66, %52, %67 : vector<8x128xi1>, vector<8x128xf32>
    %69 = arith.addf %64, %68 : vector<8x128xf32>
    %70 = arith.maximumf %24, %38 : vector<8x128xf32>
    %71 = arith.maximumf %70, %52 : vector<8x128xf32>
    %72 = arith.subf %24, %71 : vector<8x128xf32>
    %73 = math.exp %72 : vector<8x128xf32>
    %74 = arith.subf %38, %71 : vector<8x128xf32>
    %75 = math.exp %74 : vector<8x128xf32>
    %76 = arith.addf %73, %75 : vector<8x128xf32>
    %77 = arith.subf %52, %71 : vector<8x128xf32>
    %78 = math.exp %77 : vector<8x128xf32>
    %79 = arith.addf %76, %78 : vector<8x128xf32>
    %80 = math.log %79 : vector<8x128xf32>
    %81 = arith.addf %80, %71 : vector<8x128xf32>
    %82 = tpu.iota {dimensions = array<i32: 0>} : vector<8x128xi32>
    %83 = tpu.iota {dimensions = array<i32: 1>} : vector<8x128xi32>
    %c8_i32 = arith.constant 8 : i32
    %84 = arith.muli %arg0, %c8_i32 : i32
    %85 = vector.broadcast %84 : i32 to vector<8x128xi32>
    %86 = arith.addi %85, %82 : vector<8x128xi32>
    %c128_i32 = arith.constant 128 : i32
    %87 = vector.broadcast %c128_i32 : i32 to vector<8x128xi32>
    %88 = arith.muli %86, %87 : vector<8x128xi32>
    %89 = arith.addi %88, %83 : vector<8x128xi32>
    %c0_33 = arith.constant 0 : index
    %90 = memref.load %arg1[%c0_33] : memref<1xi32, #tpu.memory_space<smem>>
    %91 = vector.broadcast %90 : i32 to vector<8x128xi32>
    %92 = arith.cmpi slt, %89, %91 : vector<8x128xi32>
    %93 = arith.extui %92 : vector<8x128xi1> to vector<8x128xi32>
    %94 = arith.sitofp %93 : vector<8x128xi32> to vector<8x128xf32>
    %95 = arith.subf %81, %69 : vector<8x128xf32>
    %96 = arith.mulf %95, %94 : vector<8x128xf32>
    %97 = vector.shape_cast %96 : vector<8x128xf32> to vector<1x8x128xf32>
    %cst_34 = arith.constant dense<0.000000e+00> : vector<8x128xf32>
    %98 = vector.multi_reduction <add>, %97, %cst_34 [0] : vector<1x8x128xf32> to vector<8x128xf32>
    %c0_35 = arith.constant 0 : index
    %c0_36 = arith.constant 0 : index
    %c0_37 = arith.constant 0 : index
    %99 = vector.load %arg6[%c0_35, %c0_36, %c0_37] : memref<1x8x128xf32, #tpu.memory_space<vmem>>, vector<1x8x128xf32>
    %100 = vector.shape_cast %99 : vector<1x8x128xf32> to vector<8x128xf32>
    %101 = vector.shape_cast %98 : vector<8x128xf32> to vector<1x8x128xf32>
    tpu.vector_store %arg6[%c0_35, %c0_36, %c0_37], %101 {strides = array<i32>} : memref<1x8x128xf32, #tpu.memory_space<vmem>>, vector<1x8x128xf32>,
    return
  }
  func.func @transform_0(%arg0: i32, %arg1: memref<1xi32, #tpu.memory_space<smem>>) -> (i32, i32) {
    %c0_i32 = arith.constant 0 : i32
    %c0_i32_0 = arith.constant 0 : i32
    return %arg0, %c0_i32 : i32, i32
  }
  func.func @transform_1(%arg0: i32, %arg1: memref<1xi32, #tpu.memory_space<smem>>) -> (i32, i32) {
    %c0_i32 = arith.constant 0 : i32
    %c0_i32_0 = arith.constant 0 : i32
    return %arg0, %c0_i32 : i32, i32
  }
  func.func @transform_2(%arg0: i32, %arg1: memref<1xi32, #tpu.memory_space<smem>>) -> (i32, i32) {
    %c0_i32 = arith.constant 0 : i32
    %c0_i32_0 = arith.constant 0 : i32
    %c0_i32_1 = arith.constant 0 : i32
    return %c0_i32, %c0_i32_0 : i32, i32
  }
  func.func @transform_3(%arg0: i32, %arg1: memref<1xi32, #tpu.memory_space<smem>>) -> (i32, i32, i32) {
    %c0_i32 = arith.constant 0 : i32
    %c0_i32_0 = arith.constant 0 : i32
    %c0_i32_1 = arith.constant 0 : i32
    return %c0_i32, %arg0, %c0_i32_0 : i32, i32, i32
  }
  func.func @transform_4(%arg0: i32, %arg1: memref<1xi32, #tpu.memory_space<smem>>) -> (i32, i32, i32) {
    %c0_i32 = arith.constant 0 : i32
    %c0_i32_0 = arith.constant 0 : i32
    %c0_i32_1 = arith.constant 0 : i32
    return %arg0, %c0_i32, %c0_i32_0 : i32, i32, i32
  }
}

</mosaic_0001>

<llo_original>
// kernel: tpu_custom_call.1
$region0: #{tpu_custom_call.1}
  #allocation0 [shape = 'u32[]', space=smem, size = 0x4, offset = 0x4, fixed_abs, tag = 'smem constant byte address 0x4 - core index']
  #allocation1 [shape = 'u32[72,128]{1,0:T(1,128)}', space=vmem, size = 0x9000, scoped, tag = 'internal scratch']
  #allocation2 [shape = 's32[1]{0}', space=sflag, size = 0x4, scoped, tag = 'scoped memory for tpu_custom_call.1']
  #allocation3 [shape = 's32[1]{0:T(128)S(6)}', space=smem, size = 0x200, scoped, tag = 'prefetched SMEM operand 0']
  %s0 = inlined_call_operand.<no memory space> [shape: s32[1], index: 0, kind: input, shape index: {}]
  %s1 = inlined_call_operand.hbm [shape: s32[8,128], index: 1, kind: input, shape index: {}]
  %s2 = inlined_call_operand.hbm [shape: s32[8,128], index: 2, kind: input, shape index: {}]
  %s3 = inlined_call_operand.hbm [shape: f32[3,3], index: 3, kind: input, shape index: {}]
  %s4 = inlined_call_operand.hbm [shape: f32[3,8,128], index: 4, kind: output, shape index: {0}]
  %s5 = inlined_call_operand.hbm [shape: f32[1,8,128], index: 5, kind: output, shape index: {1}]
  %6 = xla_tuple %s4, %s5
  %s7 = sld [smem:[#allocation0]]
  $region42: #{tpu_custom_call.1} parent=0
    _
  %s9 = ssub.s32 1, %s7
  %s10 = scalar_select 0, %s9, %s7
  %11 = sst [smem:[#allocation3]] %s0
  $region1: #{tpu_custom_call.1} parent=0
    #allocation4 [shape = 'u8[4096]{0}', space=vmem, size = 0x1000, scoped, tag = 'input window, operand 1, single buffered']
    #allocation5 [shape = 's32[1]{0}', space=sflag, size = 0x4, scoped, tag = 'scoped memory for tpu_custom_call.1']
    #allocation6 [shape = 's32[1]{0}', space=sflag, size = 0x4, scoped, tag = 'scoped memory for tpu_custom_call.1']
    #allocation7 [shape = 's32[1]{0}', space=sflag, size = 0x4, scoped, tag = 'scoped memory for tpu_custom_call.1']
    #allocation8 [shape = 'u8[4096]{0}', space=vmem, size = 0x1000, scoped, tag = 'input window, operand 2, single buffered']
    #allocation9 [shape = 's32[1]{0}', space=sflag, size = 0x4, scoped, tag = 'scoped memory for tpu_custom_call.1']
    #allocation10 [shape = 'u8[2048]{0}', space=smem, size = 0x800, scoped, tag = 'input window, operand 3, single buffered']
    #allocation11 [shape = 'u8[12288]{0}', space=vmem, size = 0x3000, scoped, tag = 'output window, operand 0, single buffered']
    #allocation12 [shape = 'u8[4096]{0}', space=vmem, size = 0x1000, scoped, tag = 'output window, operand 1, single buffered']
    #allocation13 [shape = 's32[1]{0}', space=sflag, size = 0x4, scoped, tag = 'scoped memory for tpu_custom_call.1']
    %12 = vsyncpa [#allocation5], 0
    %13 = vsyncpa [#allocation9], 0
    %14 = vsyncpa [#allocation7], 0
    %15 = vsyncpa [#allocation6], 0
    %16 = vsyncpa [#allocation13], 0
    // Predicated region
    $region2: #{tpu_custom_call.1} parent=1 // pred_check
      _
    $region3: #{tpu_custom_call.1} parent=1 // pred_check_branch
      %18 = sbr.rel (0) target = $region5
    $region4: #{tpu_custom_call.1} parent=1 // pred_region
      %20 = vsyncadd [#allocation5], 0
      %s22 = sshll.u32 %s1, 4
      %s23 = int_to_ptr.hbm [resolvable:$true] %s22
      %s24 = sshll.u32 [#allocation4], 4
      %s25 = int_to_ptr.vmem [resolvable:$true] %s24
      %27 = dma.hbm_to_vmem [thread:$0]  %s23, 128, %s25, [#allocation5]
    $region5: #{tpu_custom_call.1} parent=1 // pred_fallthru
      _
    // Predicated region
    $region6: #{tpu_custom_call.1} parent=1 // pred_check
      _
    $region7: #{tpu_custom_call.1} parent=1 // pred_check_branch
      %29 = sbr.rel (0) target = $region9
    $region8: #{tpu_custom_call.1} parent=1 // pred_region
      %31 = vsyncadd [#allocation9], 0
      %s33 = sshll.u32 %s2, 4
      %s34 = int_to_ptr.hbm [resolvable:$true] %s33
      %s35 = sshll.u32 [#allocation8], 4
      %s36 = int_to_ptr.vmem [resolvable:$true] %s35
      %38 = dma.hbm_to_vmem [thread:$0]  %s34, 128, %s36, [#allocation9]
    $region9: #{tpu_custom_call.1} parent=1 // pred_fallthru
      _
    // Predicated region
    $region10: #{tpu_custom_call.1} parent=1 // pred_check
      _
    $region11: #{tpu_custom_call.1} parent=1 // pred_check_branch
      %40 = sbr.rel (0) target = $region13
    $region12: #{tpu_custom_call.1} parent=1 // pred_region
      %42 = vsyncadd [#allocation7], 0
      %s44 = sshll.u32 %s3, 4
      %s45 = int_to_ptr.hbm [resolvable:$true] %s44
      %47 = dma.hbm_to_smem %s45, 64, [#allocation10], [#allocation7]
    $region13: #{tpu_custom_call.1} parent=1 // pred_fallthru
      _
    // Predicated region
    $region14: #{tpu_custom_call.1} parent=1 // pred_check
      _
    $region15: #{tpu_custom_call.1} parent=1 // pred_check_branch
      %49 = sbr.rel (0) target = $region17
    $region16: #{tpu_custom_call.1} parent=1 // pred_region
      %51 = dma.done [#allocation5], 128
    $region17: #{tpu_custom_call.1} parent=1 // pred_fallthru
      _
    // Predicated region
    $region18: #{tpu_custom_call.1} parent=1 // pred_check
      _
    $region19: #{tpu_custom_call.1} parent=1 // pred_check_branch
      %53 = sbr.rel (0) target = $region21
    $region20: #{tpu_custom_call.1} parent=1 // pred_region
      %55 = dma.done [#allocation9], 128
    $region21: #{tpu_custom_call.1} parent=1 // pred_fallthru
      _
    // Predicated region
    $region22: #{tpu_custom_call.1} parent=1 // pred_check
      _
    $region23: #{tpu_custom_call.1} parent=1 // pred_check_branch
      %57 = sbr.rel (0) target = $region25
    $region24: #{tpu_custom_call.1} parent=1 // pred_region
      %59 = dma.done [#allocation7], 64
    $region25: #{tpu_custom_call.1} parent=1 // pred_fallthru
      _
    %60 = sfence
    %v61 = vld [vmem:[#allocation4] sm:$0xff]
    %v62 = vld [vmem:[#allocation8] sm:$0xff]
    %vm63 = vcmp.eq.s32.totalorder %v61, 0
    %v64 = vsel %vm63, 1, 0
    %v65 = vcvt.s32.f32 %v64
    %vm66 = vcmp.eq.s32.totalorder %v61, 1
    %v67 = vsel %vm66, 1, 0
    %v68 = vcvt.s32.f32 %v67
    %vm69 = vcmp.eq.s32.totalorder %v61, 2
    %v70 = vsel %vm69, 1, 0
    %v71 = vcvt.s32.f32 %v70
    %s72 = sld [smem:[#allocation10]]
    %v73 = vstv %s72
    %v74 = vmul.f32 %v65, %v73
    %s75 = sld [smem:[#allocation10 + $0x80]]
    %v76 = vstv %s75
    %v77 = vmul.f32 %v68, %v76
    %v78 = vadd.f32 %v74, %v77
    %s79 = sld [smem:[#allocation10 + $0x100]]
    %v80 = vstv %s79
    %v81 = vmul.f32 %v71, %v80
    %v82 = vadd.f32 %v78, %v81
    %83 = vst [vmem:[#allocation11] sm:$0xff] %v82
    %s84 = sld [smem:[#allocation10 + $0x1]]
    %v85 = vstv %s84
    %v86 = vmul.f32 %v65, %v85
    %s87 = sld [smem:[#allocation10 + $0x81]]
    %v88 = vstv %s87
    %v89 = vmul.f32 %v68, %v88
    %v90 = vadd.f32 %v86, %v89
    %s91 = sld [smem:[#allocation10 + $0x101]]
    %v92 = vstv %s91
    %v93 = vmul.f32 %v71, %v92
    %v94 = vadd.f32 %v90, %v93
    %s95 = scalar_lea.vmem [#allocation11], 8
    %96 = vst [vmem:[%s95] sm:$0xff] %v94
    %s97 = sld [smem:[#allocation10 + $0x2]]
    %v98 = vstv %s97
    %v99 = vmul.f32 %v65, %v98
    %s100 = sld [smem:[#allocation10 + $0x82]]
    %v101 = vstv %s100
    %v102 = vmul.f32 %v68, %v101
    %v103 = vadd.f32 %v99, %v102
    %s104 = sld [smem:[#allocation10 + $0x102]]
    %v105 = vstv %s104
    %v106 = vmul.f32 %v71, %v105
    %v107 = vadd.f32 %v103, %v106
    %s108 = scalar_lea.vmem [#allocation11], 16
    %109 = vst [vmem:[%s108] sm:$0xff] %v107
    %vm110 = vcmp.eq.s32.totalorder %v62, 0
    %v111 = vsel %vm110, %v82, 0.0
    %vm112 = vcmp.eq.s32.totalorder %v62, 1
    %v113 = vsel %vm112, %v94, 0.0
    %v114 = vadd.f32 %v111, %v113
    %vm115 = vcmp.eq.s32.totalorder %v62, 2
    %v116 = vsel %vm115, %v107, 0.0
    %v117 = vadd.f32 %v114, %v116
    %v118 = vmax.f32 %v82, %v94
    %v119 = vmax.f32 %v118, %v107
    %v120 = vsub.f32 %v82, %v119
    %v121 = vmul.f32 %v120, 1.442695
    %v122 = vpow.pop %v121
    %v123 = vsub.f32 %v94, %v119
    %v124 = vmul.f32 %v123, 1.442695
    %v125 = vpow.pop %v124
    %v126 = vadd.f32 %v122, %v125
    %v127 = vsub.f32 %v107, %v119
    %v128 = vmul.f32 %v127, 1.442695
    %v129 = vpow.pop %v128
    %v130 = vadd.f32 %v126, %v129
    %v131 = vlog2.pop %v130
    %v132 = vmul.f32 %v131, 0.6931472
    %v133 = vadd.f32 %v132, %v119
    %v134 = vlaneseq
    %v135 = vshrl.u32 %v134, 7
    %v136 = vlaneseq
    %v137 = vand.u32 %v136, 127
    %s138 = smul.u32 0, 8
    %v139 = vstv %s138
    %v140 = vadd.s32 %v139, %v135
    %v141 = vmul.u32 %v140, 128
    %v142 = vadd.s32 %v141, %v137
    %s143 = sld [smem:[#allocation3]]
    %v144 = vstv %s143
    %vm145 = vcmp.lt.s32.totalorder %v142, %v144
    %v146 = vsel %vm145, 1, 0
    %v147 = vcvt.s32.f32 %v146
    %v148 = vsub.f32 %v133, %v117
    %v149 = vmul.f32 %v148, %v147
    %v150 = vadd.f32 %v149, 0.0
    %151 = vst [vmem:[#allocation12] sm:$0xff] %v150
    // Predicated region
    $region26: #{tpu_custom_call.1} parent=1 // pred_check
      _
    $region27: #{tpu_custom_call.1} parent=1 // pred_check_branch
      %153 = sbr.rel (0) target = $region29
    $region28: #{tpu_custom_call.1} parent=1 // pred_region
      %155 = vsyncadd [#allocation6], 0
      %s156 = sshll.u32 [#allocation11], 4
      %s157 = int_to_ptr.vmem [resolvable:$true] %s156
      %s158 = sshll.u32 %s4, 4
      %s159 = int_to_ptr.hbm [resolvable:$true] %s158
      %164 = dma.vmem_to_hbm [thread:$0]  %s157, 384, %s159, [#allocation6], 128, 128, 8
    $region29: #{tpu_custom_call.1} parent=1 // pred_fallthru
      _
    // Predicated region
    $region30: #{tpu_custom_call.1} parent=1 // pred_check
      _
    $region31: #{tpu_custom_call.1} parent=1 // pred_check_branch
      %166 = sbr.rel (0) target = $region33
    $region32: #{tpu_custom_call.1} parent=1 // pred_region
      %168 = vsyncadd [#allocation13], 0
      %s170 = sshll.u32 [#allocation12], 4
      %s171 = int_to_ptr.vmem [resolvable:$true] %s170
      %s172 = sshll.u32 %s5, 4
      %s173 = int_to_ptr.hbm [resolvable:$true] %s172
      %175 = dma.vmem_to_hbm [thread:$0]  %s171, 128, %s173, [#allocation13]
    $region33: #{tpu_custom_call.1} parent=1 // pred_fallthru
      _
    // Predicated region
    $region34: #{tpu_custom_call.1} parent=1 // pred_check
      _
    $region35: #{tpu_custom_call.1} parent=1 // pred_check_branch
      %177 = sbr.rel (0) target = $region37
    $region36: #{tpu_custom_call.1} parent=1 // pred_region
      %179 = dma.done [#allocation6], 384
    $region37: #{tpu_custom_call.1} parent=1 // pred_fallthru
      _
    // Predicated region
    $region38: #{tpu_custom_call.1} parent=1 // pred_check
      _
    $region39: #{tpu_custom_call.1} parent=1 // pred_check_branch
      %181 = sbr.rel (0) target = $region41
    $region40: #{tpu_custom_call.1} parent=1 // pred_region
      %183 = dma.done [#allocation13], 128
    $region41: #{tpu_custom_call.1} parent=1 // pred_fallthru
      _
    %184 = vsyncpa [#allocation5], 1
    %185 = vsyncpa [#allocation9], 1
    %186 = vsyncpa [#allocation6], 1
    %187 = vsyncpa [#allocation13], 1
    %188 = vsyncpa [#allocation7], 1

</llo_original>
